<compile_context>
chip_gen: v7x
topology: tpu7x:2x2x1
jax: 0.10.0
libtpu: 0.0.40
codegen_flags: <defaults>
</compile_context>

<pallas_src>
import jax
import jax.numpy as jnp
import numpy as np
from jax.experimental import pallas as pl
from jax.experimental.pallas import tpu as pltpu

BN_EPS = 1e-5


# --------------------------------- kernels ----------------------------------


def gap_kernel(x_ref, gfeat_ref):
    """Global average pool over spatial positions for one batch tile.

    x_ref:     (tb, HW, C)  trunk feature-map tile, channels-last (bf16 or f32)
    gfeat_ref: (tb, C)      f32 global_feat tile
    """
    hw = x_ref.shape[1]
    # f32 accumulation fused into the reduce: no full-tile f32 upcast temp.
    s = jnp.sum(x_ref[...], axis=1, dtype=jnp.float32)
    gfeat_ref[...] = s * (1.0 / hw)


def bnneck_kernel(gf_ref, gamma_ref, beta_ref, feat_ref):
    """BatchNorm1d (training-mode batch stats) + affine + bf16 cast, computed once.

    gf_ref:    (B, C) f32 global_feat (fully resident)
    gamma_ref: (1, C) BN weight
    beta_ref:  (1, C) BN bias
    feat_ref:  (B, C) bf16 normalized feature (classifier input)
    """
    gf = gf_ref[...]
    mu = jnp.mean(gf, axis=0, keepdims=True)
    # Biased variance — matches nn.BatchNorm1d normalization in training mode.
    var = jnp.mean((gf - mu) * (gf - mu), axis=0, keepdims=True)
    feat = (gf - mu) * jax.lax.rsqrt(var + BN_EPS)
    feat = feat * gamma_ref[...] + beta_ref[...]
    feat_ref[...] = feat.astype(feat_ref.dtype)
    # TODO(synk): PyTorch BatchNorm1d also updates running_mean/running_var as a side
    # effect in training; those running stats are not emitted by this kernel.


def classifier_kernel(feat_ref, w_ref, cls_ref):
    """Linear(bias=False) for one lane-dense class tile: (B, C) x (C, tn) -> (B, tn)."""
    cls_ref[...] = jnp.dot(feat_ref[...], w_ref[...],
                           preferred_element_type=jnp.float32)


# ------------------------------ tiling helpers -------------------------------


def _tpu_vmem_capacity_bytes():
    """Best-effort VMEM capacity query; conservative (v7x per-TC) fallback."""
    try:
        cap = int(pltpu.get_tpu_info().vmem_capacity_bytes)
        if cap > 0:
            return cap
    except Exception:
        pass
    return 64 << 20


def _gap_budget_and_cap():
    """Generation-aware GAP x-tile byte budget and vmem_limit cap."""
    vmem = _tpu_vmem_capacity_bytes()
    if vmem >= (100 << 20):            # v5e / v6e: 128 MiB VMEM per core
        return 12 << 20, 96 << 20
    return 6 << 20, 48 << 20           # v7x: 64 MiB per TensorCore


def _pick_batch_tile(batch, hw, channels, itemsize, budget_bytes):
    """Largest batch tile under the budget; prefers >=2 grid steps (v7x megacore)."""
    row_bytes = hw * channels * itemsize
    cands = sorted({t for t in range(8, batch + 1, 8) if batch % t == 0} | {batch})
    fitting = [t for t in cands if t * row_bytes <= budget_bytes]
    if not fitting:
        return min(cands)
    multi = [t for t in fitting if batch // t >= 2]
    return max(multi) if multi else max(fitting)


def _class_tiling(num_classes):
    """(npad, tn): lane-dense 256-multiple tiles, prefer tn=512 with >=2 grid steps."""
    npad512 = -(-num_classes // 512) * 512
    if npad512 // 512 >= 2:
        return npad512, 512
    npad256 = -(-num_classes // 256) * 256
    if npad256 // 256 >= 2:
        return npad256, 256
    return npad256, npad256            # tiny class counts: single lane-dense tile


def _vmem_limit(buffer_bytes, cap, margin=8 << 20):
    """Pipeline buffers + compiler scratch margin, clamped to the per-chip cap."""
    total = int(buffer_bytes) + margin
    return int(min(max(total, 16 << 20), cap))


# ------------------------------ parameter prep -------------------------------


def prepare_classifier_weight(cls_weight, npad):
    """One-time re-layout of the torch Linear weight (N, C) -> bf16 (C, npad).

    In a real training setup this is the stored parameter layout (done once), so no
    per-forward transpose/pad HBM traffic is paid in the hot path.
    """
    n, c = cls_weight.shape
    w_t = jnp.transpose(cls_weight).astype(jnp.bfloat16)       # (C, N)
    if npad != n:
        w_t = jnp.pad(w_t, ((0, 0), (0, npad - n)))
    return w_t


# --------------------------------- wrapper -----------------------------------


def backbone_head(feature_map_nhwc, bn_gamma, bn_beta, w_t, num_classes):
    """Fused Backbone head: GAP + BatchNorm1d bnneck + Linear classifier.

    feature_map_nhwc: (B, H, W, C) trunk output, channels-last (bf16 or f32).
    bn_gamma, bn_beta: (C,) BatchNorm1d affine parameters.
    w_t:               (C, npad) pre-transposed, bf16, lane-padded classifier weight
                       (see prepare_classifier_weight).
    Returns (cls_score (B, num_classes) f32, global_feat (B, C) f32).
    """
    B, H, W, C = feature_map_nhwc.shape
    hw = H * W
    npad, tn = _class_tiling(num_classes)
    assert w_t.shape == (C, npad), (w_t.shape, (C, npad))

    budget, cap = _gap_budget_and_cap()

    # Free re-view: channels are already last, so no transpose / HBM traffic here.
    x = feature_map_nhwc.reshape(B, hw, C)

    # ---- kernel 1: global average pool (streams the big feature map) -------
    tb = _pick_batch_tile(B, hw, C, x.dtype.itemsize, budget)
    gap_bufs = 2 * (tb * hw * C * x.dtype.itemsize) + 2 * (tb * C * 4)
    global_feat = pl.pallas_call(
        gap_kernel,
        out_shape=jax.ShapeDtypeStruct((B, C), jnp.float32),
        grid=(B // tb,),
        in_specs=[pl.BlockSpec((tb, hw, C), lambda i: (i, 0, 0))],
        out_specs=pl.BlockSpec((tb, C), lambda i: (i, 0)),
        compiler_params=pltpu.CompilerParams(
            dimension_semantics=("parallel",),
            vmem_limit_bytes=_vmem_limit(gap_bufs, cap),
        ),
    )(x)

    # ---- kernel 2: bnneck prologue (hoisted batch stats + affine + bf16 cast) ----
    gamma = bn_gamma.reshape(1, C).astype(jnp.float32)
    beta = bn_beta.reshape(1, C).astype(jnp.float32)
    bn_bufs = 2 * (B * C * 4 + 2 * C * 4 + B * C * 2)
    feat_bf16 = pl.pallas_call(
        bnneck_kernel,
        out_shape=jax.ShapeDtypeStruct((B, C), jnp.bfloat16),
        grid=(1,),
        in_specs=[
            pl.BlockSpec((B, C), lambda i: (0, 0)),
            pl.BlockSpec((1, C), lambda i: (0, 0)),
            pl.BlockSpec((1, C), lambda i: (0, 0)),
        ],
        out_specs=pl.BlockSpec((B, C), lambda i: (0, 0)),
        compiler_params=pltpu.CompilerParams(
            dimension_semantics=("arbitrary",),
            vmem_limit_bytes=_vmem_limit(bn_bufs, cap),
        ),
    )(global_feat, gamma, beta)

    # ---- kernel 3: classifier (pure bf16 MXU matmul, streams class-tiled weight) ----
    try:
        # Weight stream is the bound resource after hoisting BN -> deeper buffering.
        w_spec = pl.BlockSpec((C, tn), lambda j: (0, j), pipeline_mode=pl.Buffered(3))
        n_wbuf = 3
    except TypeError:
        w_spec = pl.BlockSpec((C, tn), lambda j: (0, j))
        n_wbuf = 2
    cls_bufs = 2 * (B * C * 2) + n_wbuf * (C * tn * 2) + 2 * (B * tn * 4)
    cls_score = pl.pallas_call(
        classifier_kernel,
        out_shape=jax.ShapeDtypeStruct((B, npad), jnp.float32),
        grid=(npad // tn,),
        in_specs=[
            pl.BlockSpec((B, C), lambda j: (0, 0)),   # bf16 feat: constant block, fetched once
            w_spec,                                    # weight tile
        ],
        out_specs=pl.BlockSpec((B, tn), lambda j: (0, j)),
        compiler_params=pltpu.CompilerParams(
            dimension_semantics=("parallel",),
            vmem_limit_bytes=_vmem_limit(cls_bufs, cap),
        ),
    )(feat_bf16, w_t)

    if npad != num_classes:
        cls_score = cls_score[:, :num_classes]
    return cls_score, global_feat


# -------------------------------- reference ----------------------------------


def reference_head(feature_map_nhwc, bn_gamma, bn_beta, cls_weight):
    """Pure-JAX f32 mirror of the PyTorch forward (training, cos_layer=False)."""
    x = feature_map_nhwc.astype(jnp.float32)
    gf = jnp.mean(x, axis=(1, 2))                               # GAP -> (B, C)
    mu = jnp.mean(gf, axis=0, keepdims=True)
    var = jnp.mean((gf - mu) ** 2, axis=0, keepdims=True)
    feat = (gf - mu) / jnp.sqrt(var + BN_EPS)
    feat = feat * bn_gamma[None, :].astype(jnp.float32) + bn_beta[None, :].astype(jnp.float32)
    cls = feat @ cls_weight.astype(jnp.float32).T
    return cls, gf


if __name__ == "__main__":
    # Small-but-consistent shapes: in_planes fixed at 2048 by the module (ResNet50),
    # tiny 4x4 spatial map, small batch and class count.
    B, H, W, C = 2, 4, 4, 2048
    NUM_CLASSES = 128

    key = jax.random.PRNGKey(0)
    k_x, k_w = jax.random.split(key)

    # Trunk output stand-in: channels-last, bf16 (recommended streaming layout/dtype).
    feat_map = jax.random.normal(k_x, (B, H, W, C), dtype=jnp.float32).astype(jnp.bfloat16)

    # Parameter init matching the module's init functions:
    #   bottleneck (BatchNorm1d): weight=1, bias=0            (weights_init_kaiming)
    #   classifier (Linear, bias=False): weight ~ N(0, 0.001) (weights_init_classifier)
    bn_gamma = jnp.ones((C,), dtype=jnp.float32)
    bn_beta = jnp.zeros((C,), dtype=jnp.float32)
    cls_weight = (0.001 * jax.random.normal(k_w, (NUM_CLASSES, C), dtype=jnp.float32)
                  ).astype(jnp.bfloat16)

    # One-time parameter re-layout (stored layout in a real setup; not per-forward).
    npad, _ = _class_tiling(NUM_CLASSES)
    w_t = prepare_classifier_weight(cls_weight, npad)

    cls_score, global_feat = backbone_head(feat_map, bn_gamma, bn_beta, w_t, NUM_CLASSES)
    jax.block_until_ready((cls_score, global_feat))

    ref_cls, ref_gf = reference_head(feat_map, bn_gamma, bn_beta, cls_weight)
    np.testing.assert_allclose(np.asarray(global_feat), np.asarray(ref_gf),
                               rtol=1e-5, atol=1e-5)
    # Classifier operands go through the MXU in bf16 (feat stored bf16) -> looser tolerance.
    np.testing.assert_allclose(np.asarray(cls_score), np.asarray(ref_cls),
                               rtol=5e-2, atol=5e-3)

    print("KERNEL_OK")
</pallas_src>

<mosaic_0001>
module attributes {stable_mosaic.version = 11 : i64} {
  func.func @gap_kernel(%arg0: i32, %arg1: memref<2x16x2048xbf16, #tpu.memory_space<vmem>>, %arg2: memref<2x2048xf32, #tpu.memory_space<vmem>>) attributes {dimension_semantics = [#tpu.dimension_semantics<parallel>], iteration_bounds = array<i64: 1>, scalar_prefetch = 0 : i64, scratch_operands = 0 : i64, tpu.core_type = #tpu.core_type<tc>, window_params = [{transform_indices = @transform_0, window_bounds = array<i64: 2, 16, 2048>}, {transform_indices = @transform_1, window_bounds = array<i64: 2, 2048>}]} {
    %c0 = arith.constant 0 : index
    %c0_0 = arith.constant 0 : index
    %c0_1 = arith.constant 0 : index
    %0 = vector.load %arg1[%c0, %c0_0, %c0_1] : memref<2x16x2048xbf16, #tpu.memory_space<vmem>>, vector<2x16x2048xbf16>
    %1 = arith.extf %0 : vector<2x16x2048xbf16> to vector<2x16x2048xf32>
    %cst = arith.constant dense<0.000000e+00> : vector<2x2048xf32>
    %2 = vector.multi_reduction <add>, %1, %cst [1] : vector<2x16x2048xf32> to vector<2x2048xf32>
    %cst_2 = arith.constant 6.250000e-02 : f32
    %3 = vector.broadcast %cst_2 : f32 to vector<2x2048xf32>
    %4 = arith.mulf %2, %3 : vector<2x2048xf32>
    %c0_3 = arith.constant 0 : index
    %c0_4 = arith.constant 0 : index
    %5 = vector.load %arg2[%c0_3, %c0_4] : memref<2x2048xf32, #tpu.memory_space<vmem>>, vector<2x2048xf32>
    tpu.vector_store %arg2[%c0_3, %c0_4], %4 {strides = array<i32>} : memref<2x2048xf32, #tpu.memory_space<vmem>>, vector<2x2048xf32>,
    return
  }
  func.func @transform_0(%arg0: i32) -> (i32, i32, i32) {
    %c0_i32 = arith.constant 0 : i32
    %c0_i32_0 = arith.constant 0 : i32
    %c0_i32_1 = arith.constant 0 : i32
    return %arg0, %c0_i32, %c0_i32_0 : i32, i32, i32
  }
  func.func @transform_1(%arg0: i32) -> (i32, i32) {
    %c0_i32 = arith.constant 0 : i32
    %c0_i32_0 = arith.constant 0 : i32
    return %arg0, %c0_i32 : i32, i32
  }
}

</mosaic_0001>

<llo_original>
// kernel: tpu_custom_call.1
$region0: #{tpu_custom_call.1}
  #allocation0 [shape = 'u32[]', space=smem, size = 0x4, offset = 0x4, fixed_abs, tag = 'smem constant byte address 0x4 - core index']
  #allocation1 [shape = 'u32[144,128]{1,0:T(1,128)}', space=vmem, size = 0x12000, scoped, tag = 'internal scratch']
  %s0 = inlined_call_operand.hbm [shape: bf16[2,16,2048], index: 0, kind: input, shape index: {}]
  %s1 = inlined_call_operand.hbm [shape: f32[2,2048], index: 1, kind: output, shape index: {}]
  %s2 = sld [smem:[#allocation0]]
  $region18: #{tpu_custom_call.1} parent=0
    _
  %s4 = ssub.s32 1, %s2
  %s5 = scalar_select 0, %s4, %s2
  $region1: #{tpu_custom_call.1} parent=0
    #allocation2 [shape = 'u8[131072]{0}', space=vmem, size = 0x20000, scoped, tag = 'input window, operand 0, single buffered']
    #allocation3 [shape = 's32[1]{0}', space=sflag, size = 0x4, scoped, tag = 'scoped memory for tpu_custom_call.1']
    #allocation4 [shape = 's32[1]{0}', space=sflag, size = 0x4, scoped, tag = 'scoped memory for tpu_custom_call.1']
    #allocation5 [shape = 'u8[16384]{0}', space=vmem, size = 0x4000, scoped, tag = 'output window, operand 0, single buffered']
    %6 = vsyncpa [#allocation3], 0
    %7 = vsyncpa [#allocation4], 0
    // Predicated region
    $region2: #{tpu_custom_call.1} parent=1 // pred_check
      _
    $region3: #{tpu_custom_call.1} parent=1 // pred_check_branch
      %9 = sbr.rel (0) target = $region5
    $region4: #{tpu_custom_call.1} parent=1 // pred_region
      %s11 = ssub.s32 4096, 4096
      %12 = vsyncadd [#allocation3], %s11
      %s13 = sshll.u32 [#allocation2], 4
      %s14 = int_to_ptr.vmem [resolvable:$true] %s13
      %19 = dma.hbm_to_vmem [thread:$0]  %s0, 4096, %s14, [#allocation3], 1024, 1024, 64
    $region5: #{tpu_custom_call.1} parent=1 // pred_fallthru
      _
    // Predicated region
    $region6: #{tpu_custom_call.1} parent=1 // pred_check
      _
    $region7: #{tpu_custom_call.1} parent=1 // pred_check_branch
      %21 = sbr.rel (0) target = $region9
    $region8: #{tpu_custom_call.1} parent=1 // pred_region
      %22 = dma.done [#allocation3], 4096
    $region9: #{tpu_custom_call.1} parent=1 // pred_fallthru
      _
    %v23 = vld [vmem:[#allocation2] sm:$0xff]
    %v24 = vld [vmem:[#allocation2 + $0x8] sm:$0xff]
    %v25 = vld [vmem:[#allocation2 + $0x10] sm:$0xff]
    %v26 = vld [vmem:[#allocation2 + $0x18] sm:$0xff]
    %v27 = vld [vmem:[#allocation2 + $0x20] sm:$0xff]
    %v28 = vld [vmem:[#allocation2 + $0x28] sm:$0xff]
    %v29 = vld [vmem:[#allocation2 + $0x30] sm:$0xff]
    %v30 = vld [vmem:[#allocation2 + $0x38] sm:$0xff]
    %v31 = vld [vmem:[#allocation2 + $0x40] sm:$0xff]
    %v32 = vld [vmem:[#allocation2 + $0x48] sm:$0xff]
    %v33 = vld [vmem:[#allocation2 + $0x50] sm:$0xff]
    %v34 = vld [vmem:[#allocation2 + $0x58] sm:$0xff]
    %v35 = vld [vmem:[#allocation2 + $0x60] sm:$0xff]
    %v36 = vld [vmem:[#allocation2 + $0x68] sm:$0xff]
    %v37 = vld [vmem:[#allocation2 + $0x70] sm:$0xff]
    %v38 = vld [vmem:[#allocation2 + $0x78] sm:$0xff]
    %v39 = vld [vmem:[#allocation2 + $0x80] sm:$0xff]
    %v40 = vld [vmem:[#allocation2 + $0x88] sm:$0xff]
    %v41 = vld [vmem:[#allocation2 + $0x90] sm:$0xff]
    %v42 = vld [vmem:[#allocation2 + $0x98] sm:$0xff]
    %v43 = vld [vmem:[#allocation2 + $0xa0] sm:$0xff]
    %v44 = vld [vmem:[#allocation2 + $0xa8] sm:$0xff]
    %v45 = vld [vmem:[#allocation2 + $0xb0] sm:$0xff]
    %v46 = vld [vmem:[#allocation2 + $0xb8] sm:$0xff]
    %v47 = vld [vmem:[#allocation2 + $0xc0] sm:$0xff]
    %v48 = vld [vmem:[#allocation2 + $0xc8] sm:$0xff]
    %v49 = vld [vmem:[#allocation2 + $0xd0] sm:$0xff]
    %v50 = vld [vmem:[#allocation2 + $0xd8] sm:$0xff]
    %v51 = vld [vmem:[#allocation2 + $0xe0] sm:$0xff]
    %v52 = vld [vmem:[#allocation2 + $0xe8] sm:$0xff]
    %v53 = vld [vmem:[#allocation2 + $0xf0] sm:$0xff]
    %v54 = vld [vmem:[#allocation2 + $0xf8] sm:$0xff]
    %v55 = vunpack.c.l.bf16 %v23
    %v56 = vunpack.c.h.bf16 %v23
    %v57 = vunpack.c.l.bf16 %v24
    %v58 = vunpack.c.h.bf16 %v24
    %v59 = vunpack.c.l.bf16 %v25
    %v60 = vunpack.c.h.bf16 %v25
    %v61 = vunpack.c.l.bf16 %v26
    %v62 = vunpack.c.h.bf16 %v26
    %v63 = vunpack.c.l.bf16 %v27
    %v64 = vunpack.c.h.bf16 %v27
    %v65 = vunpack.c.l.bf16 %v28
    %v66 = vunpack.c.h.bf16 %v28
    %v67 = vunpack.c.l.bf16 %v29
    %v68 = vunpack.c.h.bf16 %v29
    %v69 = vunpack.c.l.bf16 %v30
    %v70 = vunpack.c.h.bf16 %v30
    %v71 = vunpack.c.l.bf16 %v31
    %v72 = vunpack.c.h.bf16 %v31
    %v73 = vunpack.c.l.bf16 %v32
    %v74 = vunpack.c.h.bf16 %v32
    %v75 = vunpack.c.l.bf16 %v33
    %v76 = vunpack.c.h.bf16 %v33
    %v77 = vunpack.c.l.bf16 %v34
    %v78 = vunpack.c.h.bf16 %v34
    %v79 = vunpack.c.l.bf16 %v35
    %v80 = vunpack.c.h.bf16 %v35
    %v81 = vunpack.c.l.bf16 %v36
    %v82 = vunpack.c.h.bf16 %v36
    %v83 = vunpack.c.l.bf16 %v37
    %v84 = vunpack.c.h.bf16 %v37
    %v85 = vunpack.c.l.bf16 %v38
    %v86 = vunpack.c.h.bf16 %v38
    %v87 = vunpack.c.l.bf16 %v39
    %v88 = vunpack.c.h.bf16 %v39
    %v89 = vunpack.c.l.bf16 %v40
    %v90 = vunpack.c.h.bf16 %v40
    %v91 = vunpack.c.l.bf16 %v41
    %v92 = vunpack.c.h.bf16 %v41
    %v93 = vunpack.c.l.bf16 %v42
    %v94 = vunpack.c.h.bf16 %v42
    %v95 = vunpack.c.l.bf16 %v43
    %v96 = vunpack.c.h.bf16 %v43
    %v97 = vunpack.c.l.bf16 %v44
    %v98 = vunpack.c.h.bf16 %v44
    %v99 = vunpack.c.l.bf16 %v45
    %v100 = vunpack.c.h.bf16 %v45
    %v101 = vunpack.c.l.bf16 %v46
    %v102 = vunpack.c.h.bf16 %v46
    %v103 = vunpack.c.l.bf16 %v47
    %v104 = vunpack.c.h.bf16 %v47
    %v105 = vunpack.c.l.bf16 %v48
    %v106 = vunpack.c.h.bf16 %v48
    %v107 = vunpack.c.l.bf16 %v49
    %v108 = vunpack.c.h.bf16 %v49
    %v109 = vunpack.c.l.bf16 %v50
    %v110 = vunpack.c.h.bf16 %v50
    %v111 = vunpack.c.l.bf16 %v51
    %v112 = vunpack.c.h.bf16 %v51
    %v113 = vunpack.c.l.bf16 %v52
    %v114 = vunpack.c.h.bf16 %v52
    %v115 = vunpack.c.l.bf16 %v53
    %v116 = vunpack.c.h.bf16 %v53
    %v117 = vunpack.c.l.bf16 %v54
    %v118 = vunpack.c.h.bf16 %v54
    %v119 = vadd.f32 %v55, %v71
    %v120 = vrot.slane %v119, 4
    %v121 = vadd.f32 %v119, %v120
    %v122 = vrot.slane %v121, 2
    %v123 = vadd.f32 %v121, %v122
    %v124 = vrot.slane %v123, 1
    %v125 = vadd.f32 %v123, %v124
    %v126 = vadd.f32 %v56, %v72
    %v127 = vrot.slane %v126, 4
    %v128 = vadd.f32 %v126, %v127
    %v129 = vrot.slane %v128, 2
    %v130 = vadd.f32 %v128, %v129
    %v131 = vrot.slane %v130, 1
    %v132 = vadd.f32 %v130, %v131
    %v133 = vadd.f32 %v57, %v73
    %v134 = vrot.slane %v133, 4
    %v135 = vadd.f32 %v133, %v134
    %v136 = vrot.slane %v135, 2
    %v137 = vadd.f32 %v135, %v136
    %v138 = vrot.slane %v137, 1
    %v139 = vadd.f32 %v137, %v138
    %v140 = vadd.f32 %v58, %v74
    %v141 = vrot.slane %v140, 4
    %v142 = vadd.f32 %v140, %v141
    %v143 = vrot.slane %v142, 2
    %v144 = vadd.f32 %v142, %v143
    %v145 = vrot.slane %v144, 1
    %v146 = vadd.f32 %v144, %v145
    %v147 = vadd.f32 %v59, %v75
    %v148 = vrot.slane %v147, 4
    %v149 = vadd.f32 %v147, %v148
    %v150 = vrot.slane %v149, 2
    %v151 = vadd.f32 %v149, %v150
    %v152 = vrot.slane %v151, 1
    %v153 = vadd.f32 %v151, %v152
    %v154 = vadd.f32 %v60, %v76
    %v155 = vrot.slane %v154, 4
    %v156 = vadd.f32 %v154, %v155
    %v157 = vrot.slane %v156, 2
    %v158 = vadd.f32 %v156, %v157
    %v159 = vrot.slane %v158, 1
    %v160 = vadd.f32 %v158, %v159
    %v161 = vadd.f32 %v61, %v77
    %v162 = vrot.slane %v161, 4
    %v163 = vadd.f32 %v161, %v162
    %v164 = vrot.slane %v163, 2
    %v165 = vadd.f32 %v163, %v164
    %v166 = vrot.slane %v165, 1
    %v167 = vadd.f32 %v165, %v166
    %v168 = vadd.f32 %v62, %v78
    %v169 = vrot.slane %v168, 4
    %v170 = vadd.f32 %v168, %v169
    %v171 = vrot.slane %v170, 2
    %v172 = vadd.f32 %v170, %v171
    %v173 = vrot.slane %v172, 1
    %v174 = vadd.f32 %v172, %v173
    %v175 = vadd.f32 %v63, %v79
    %v176 = vrot.slane %v175, 4
    %v177 = vadd.f32 %v175, %v176
    %v178 = vrot.slane %v177, 2
    %v179 = vadd.f32 %v177, %v178
    %v180 = vrot.slane %v179, 1
    %v181 = vadd.f32 %v179, %v180
    %v182 = vadd.f32 %v64, %v80
    %v183 = vrot.slane %v182, 4
    %v184 = vadd.f32 %v182, %v183
    %v185 = vrot.slane %v184, 2
    %v186 = vadd.f32 %v184, %v185
    %v187 = vrot.slane %v186, 1
    %v188 = vadd.f32 %v186, %v187
    %v189 = vadd.f32 %v65, %v81
    %v190 = vrot.slane %v189, 4
    %v191 = vadd.f32 %v189, %v190
    %v192 = vrot.slane %v191, 2
    %v193 = vadd.f32 %v191, %v192
    %v194 = vrot.slane %v193, 1
    %v195 = vadd.f32 %v193, %v194
    %v196 = vadd.f32 %v66, %v82
    %v197 = vrot.slane %v196, 4
    %v198 = vadd.f32 %v196, %v197
    %v199 = vrot.slane %v198, 2
    %v200 = vadd.f32 %v198, %v199
    %v201 = vrot.slane %v200, 1
    %v202 = vadd.f32 %v200, %v201
    %v203 = vadd.f32 %v67, %v83
    %v204 = vrot.slane %v203, 4
    %v205 = vadd.f32 %v203, %v204
    %v206 = vrot.slane %v205, 2
    %v207 = vadd.f32 %v205, %v206
    %v208 = vrot.slane %v207, 1
    %v209 = vadd.f32 %v207, %v208
    %v210 = vadd.f32 %v68, %v84
    %v211 = vrot.slane %v210, 4
    %v212 = vadd.f32 %v210, %v211
    %v213 = vrot.slane %v212, 2
    %v214 = vadd.f32 %v212, %v213
    %v215 = vrot.slane %v214, 1
    %v216 = vadd.f32 %v214, %v215
    %v217 = vadd.f32 %v69, %v85
    %v218 = vrot.slane %v217, 4
    %v219 = vadd.f32 %v217, %v218
    %v220 = vrot.slane %v219, 2
    %v221 = vadd.f32 %v219, %v220
    %v222 = vrot.slane %v221, 1
    %v223 = vadd.f32 %v221, %v222
    %v224 = vadd.f32 %v70, %v86
    %v225 = vrot.slane %v224, 4
    %v226 = vadd.f32 %v224, %v225
    %v227 = vrot.slane %v226, 2
    %v228 = vadd.f32 %v226, %v227
    %v229 = vrot.slane %v228, 1
    %v230 = vadd.f32 %v228, %v229
    %v231 = vadd.f32 %v87, %v103
    %v232 = vrot.slane %v231, 4
    %v233 = vadd.f32 %v231, %v232
    %v234 = vrot.slane %v233, 2
    %v235 = vadd.f32 %v233, %v234
    %v236 = vrot.slane %v235, 1
    %v237 = vadd.f32 %v235, %v236
    %v238 = vadd.f32 %v88, %v104
    %v239 = vrot.slane %v238, 4
    %v240 = vadd.f32 %v238, %v239
    %v241 = vrot.slane %v240, 2
    %v242 = vadd.f32 %v240, %v241
    %v243 = vrot.slane %v242, 1
    %v244 = vadd.f32 %v242, %v243
    %v245 = vadd.f32 %v89, %v105
    %v246 = vrot.slane %v245, 4
    %v247 = vadd.f32 %v245, %v246
    %v248 = vrot.slane %v247, 2
    %v249 = vadd.f32 %v247, %v248
    %v250 = vrot.slane %v249, 1
    %v251 = vadd.f32 %v249, %v250
    %v252 = vadd.f32 %v90, %v106
    %v253 = vrot.slane %v252, 4
    %v254 = vadd.f32 %v252, %v253
    %v255 = vrot.slane %v254, 2
    %v256 = vadd.f32 %v254, %v255
    %v257 = vrot.slane %v256, 1
    %v258 = vadd.f32 %v256, %v257
    %v259 = vadd.f32 %v91, %v107
    %v260 = vrot.slane %v259, 4
    %v261 = vadd.f32 %v259, %v260
    %v262 = vrot.slane %v261, 2
    %v263 = vadd.f32 %v261, %v262
    %v264 = vrot.slane %v263, 1
    %v265 = vadd.f32 %v263, %v264
    %v266 = vadd.f32 %v92, %v108
    %v267 = vrot.slane %v266, 4
    %v268 = vadd.f32 %v266, %v267
    %v269 = vrot.slane %v268, 2
    %v270 = vadd.f32 %v268, %v269
    %v271 = vrot.slane %v270, 1
    %v272 = vadd.f32 %v270, %v271
    %v273 = vadd.f32 %v93, %v109
    %v274 = vrot.slane %v273, 4
    %v275 = vadd.f32 %v273, %v274
    %v276 = vrot.slane %v275, 2
    %v277 = vadd.f32 %v275, %v276
    %v278 = vrot.slane %v277, 1
    %v279 = vadd.f32 %v277, %v278
    %v280 = vadd.f32 %v94, %v110
    %v281 = vrot.slane %v280, 4
    %v282 = vadd.f32 %v280, %v281
    %v283 = vrot.slane %v282, 2
    %v284 = vadd.f32 %v282, %v283
    %v285 = vrot.slane %v284, 1
    %v286 = vadd.f32 %v284, %v285
    %v287 = vadd.f32 %v95, %v111
    %v288 = vrot.slane %v287, 4
    %v289 = vadd.f32 %v287, %v288
    %v290 = vrot.slane %v289, 2
    %v291 = vadd.f32 %v289, %v290
    %v292 = vrot.slane %v291, 1
    %v293 = vadd.f32 %v291, %v292
    %v294 = vadd.f32 %v96, %v112
    %v295 = vrot.slane %v294, 4
    %v296 = vadd.f32 %v294, %v295
    %v297 = vrot.slane %v296, 2
    %v298 = vadd.f32 %v296, %v297
    %v299 = vrot.slane %v298, 1
    %v300 = vadd.f32 %v298, %v299
    %v301 = vadd.f32 %v97, %v113
    %v302 = vrot.slane %v301, 4
    %v303 = vadd.f32 %v301, %v302
    %v304 = vrot.slane %v303, 2
    %v305 = vadd.f32 %v303, %v304
    %v306 = vrot.slane %v305, 1
    %v307 = vadd.f32 %v305, %v306
    %v308 = vadd.f32 %v98, %v114
    %v309 = vrot.slane %v308, 4
    %v310 = vadd.f32 %v308, %v309
    %v311 = vrot.slane %v310, 2
    %v312 = vadd.f32 %v310, %v311
    %v313 = vrot.slane %v312, 1
    %v314 = vadd.f32 %v312, %v313
    %v315 = vadd.f32 %v99, %v115
    %v316 = vrot.slane %v315, 4
    %v317 = vadd.f32 %v315, %v316
    %v318 = vrot.slane %v317, 2
    %v319 = vadd.f32 %v317, %v318
    %v320 = vrot.slane %v319, 1
    %v321 = vadd.f32 %v319, %v320
    %v322 = vadd.f32 %v100, %v116
    %v323 = vrot.slane %v322, 4
    %v324 = vadd.f32 %v322, %v323
    %v325 = vrot.slane %v324, 2
    %v326 = vadd.f32 %v324, %v325
    %v327 = vrot.slane %v326, 1
    %v328 = vadd.f32 %v326, %v327
    %v329 = vadd.f32 %v101, %v117
    %v330 = vrot.slane %v329, 4
    %v331 = vadd.f32 %v329, %v330
    %v332 = vrot.slane %v331, 2
    %v333 = vadd.f32 %v331, %v332
    %v334 = vrot.slane %v333, 1
    %v335 = vadd.f32 %v333, %v334
    %v336 = vadd.f32 %v102, %v118
    %v337 = vrot.slane %v336, 4
    %v338 = vadd.f32 %v336, %v337
    %v339 = vrot.slane %v338, 2
    %v340 = vadd.f32 %v338, %v339
    %v341 = vrot.slane %v340, 1
    %v342 = vadd.f32 %v340, %v341
    %v343 = vmul.f32 %v125, 0.0625
    %v344 = vmul.f32 %v132, 0.0625
    %v345 = vmul.f32 %v139, 0.0625
    %v346 = vmul.f32 %v146, 0.0625
    %v347 = vmul.f32 %v153, 0.0625
    %v348 = vmul.f32 %v160, 0.0625
    %v349 = vmul.f32 %v167, 0.0625
    %v350 = vmul.f32 %v174, 0.0625
    %v351 = vmul.f32 %v181, 0.0625
    %v352 = vmul.f32 %v188, 0.0625
    %v353 = vmul.f32 %v195, 0.0625
    %v354 = vmul.f32 %v202, 0.0625
    %v355 = vmul.f32 %v209, 0.0625
    %v356 = vmul.f32 %v216, 0.0625
    %v357 = vmul.f32 %v223, 0.0625
    %v358 = vmul.f32 %v230, 0.0625
    %v359 = vmul.f32 %v237, 0.0625
    %v360 = vmul.f32 %v244, 0.0625
    %v361 = vmul.f32 %v251, 0.0625
    %v362 = vmul.f32 %v258, 0.0625
    %v363 = vmul.f32 %v265, 0.0625
    %v364 = vmul.f32 %v272, 0.0625
    %v365 = vmul.f32 %v279, 0.0625
    %v366 = vmul.f32 %v286, 0.0625
    %v367 = vmul.f32 %v293, 0.0625
    %v368 = vmul.f32 %v300, 0.0625
    %v369 = vmul.f32 %v307, 0.0625
    %v370 = vmul.f32 %v314, 0.0625
    %v371 = vmul.f32 %v321, 0.0625
    %v372 = vmul.f32 %v328, 0.0625
    %v373 = vmul.f32 %v335, 0.0625
    %v374 = vmul.f32 %v342, 0.0625
    %v407 = vcombine.low %v343, %v344
    %v408 = vcombine.low %v345, %v346
    %v410 = vunpack.c.l.s4 1983009808
    %v411 = vunpack.c.0.s8 %v410
    %v412 = vlaneseq
    %v413 = vshrl.u32 %v412, 7
    %v414 = vsub.s32 %v411, %v413
    %v415 = vrot.slane %v407, %v414
    %v417 = vunpack.c.l.s4 1983009808
    %v418 = vunpack.c.0.s8 %v417
    %v419 = vlaneseq
    %v420 = vshrl.u32 %v419, 7
    %v421 = vsub.s32 %v418, %v420
    %v422 = vrot.slane %v408, %v421
    %v423 = vcombine.low %v415, %v422
    %v424 = vcombine.low %v347, %v348
    %v425 = vcombine.low %v349, %v350
    %v427 = vunpack.c.l.s4 1983009808
    %v428 = vunpack.c.0.s8 %v427
    %v429 = vlaneseq
    %v430 = vshrl.u32 %v429, 7
    %v431 = vsub.s32 %v428, %v430
    %v432 = vrot.slane %v424, %v431
    %v434 = vunpack.c.l.s4 1983009808
    %v435 = vunpack.c.0.s8 %v434
    %v436 = vlaneseq
    %v437 = vshrl.u32 %v436, 7
    %v438 = vsub.s32 %v435, %v437
    %v439 = vrot.slane %v425, %v438
    %v440 = vcombine.low %v432, %v439
    %v441 = vcombine.low %v351, %v352
    %v442 = vcombine.low %v353, %v354
    %v444 = vunpack.c.l.s4 1983009808
    %v445 = vunpack.c.0.s8 %v444
    %v446 = vlaneseq
    %v447 = vshrl.u32 %v446, 7
    %v448 = vsub.s32 %v445, %v447
    %v449 = vrot.slane %v441, %v448
    %v451 = vunpack.c.l.s4 1983009808
    %v452 = vunpack.c.0.s8 %v451
    %v453 = vlaneseq
    %v454 = vshrl.u32 %v453, 7
    %v455 = vsub.s32 %v452, %v454
    %v456 = vrot.slane %v442, %v455
    %v457 = vcombine.low %v449, %v456
    %v458 = vcombine.low %v355, %v356
    %v459 = vcombine.low %v357, %v358
    %v461 = vunpack.c.l.s4 1983009808
    %v462 = vunpack.c.0.s8 %v461
    %v463 = vlaneseq
    %v464 = vshrl.u32 %v463, 7
    %v465 = vsub.s32 %v462, %v464
    %v466 = vrot.slane %v458, %v465
    %v468 = vunpack.c.l.s4 1983009808
    %v469 = vunpack.c.0.s8 %v468
    %v470 = vlaneseq
    %v471 = vshrl.u32 %v470, 7
    %v472 = vsub.s32 %v469, %v471
    %v473 = vrot.slane %v459, %v472
    %v474 = vcombine.low %v466, %v473
    %v475 = vcombine.low %v359, %v360
    %v476 = vcombine.low %v361, %v362
    %v478 = vunpack.c.l.s4 1983009808
    %v479 = vunpack.c.0.s8 %v478
    %v480 = vlaneseq
    %v481 = vshrl.u32 %v480, 7
    %v482 = vsub.s32 %v479, %v481
    %v483 = vrot.slane %v475, %v482
    %v485 = vunpack.c.l.s4 1983009808
    %v486 = vunpack.c.0.s8 %v485
    %v487 = vlaneseq
    %v488 = vshrl.u32 %v487, 7
    %v489 = vsub.s32 %v486, %v488
    %v490 = vrot.slane %v476, %v489
    %v491 = vcombine.low %v483, %v490
    %v492 = vcombine.low %v363, %v364
    %v493 = vcombine.low %v365, %v366
    %v495 = vunpack.c.l.s4 1983009808
    %v496 = vunpack.c.0.s8 %v495
    %v497 = vlaneseq
    %v498 = vshrl.u32 %v497, 7
    %v499 = vsub.s32 %v496, %v498
    %v500 = vrot.slane %v492, %v499
    %v502 = vunpack.c.l.s4 1983009808
    %v503 = vunpack.c.0.s8 %v502
    %v504 = vlaneseq
    %v505 = vshrl.u32 %v504, 7
    %v506 = vsub.s32 %v503, %v505
    %v507 = vrot.slane %v493, %v506
    %v508 = vcombine.low %v500, %v507
    %v509 = vcombine.low %v367, %v368
    %v510 = vcombine.low %v369, %v370
    %v512 = vunpack.c.l.s4 1983009808
    %v513 = vunpack.c.0.s8 %v512
    %v514 = vlaneseq
    %v515 = vshrl.u32 %v514, 7
    %v516 = vsub.s32 %v513, %v515
    %v517 = vrot.slane %v509, %v516
    %v519 = vunpack.c.l.s4 1983009808
    %v520 = vunpack.c.0.s8 %v519
    %v521 = vlaneseq
    %v522 = vshrl.u32 %v521, 7
    %v523 = vsub.s32 %v520, %v522
    %v524 = vrot.slane %v510, %v523
    %v525 = vcombine.low %v517, %v524
    %v526 = vcombine.low %v371, %v372
    %v527 = vcombine.low %v373, %v374
    %v529 = vunpack.c.l.s4 1983009808
    %v530 = vunpack.c.0.s8 %v529
    %v531 = vlaneseq
    %v532 = vshrl.u32 %v531, 7
    %v533 = vsub.s32 %v530, %v532
    %v534 = vrot.slane %v526, %v533
    %v536 = vunpack.c.l.s4 1983009808
    %v537 = vunpack.c.0.s8 %v536
    %v538 = vlaneseq
    %v539 = vshrl.u32 %v538, 7
    %v540 = vsub.s32 %v537, %v539
    %v541 = vrot.slane %v527, %v540
    %v542 = vcombine.low %v534, %v541
    %vm543 = vcmask 1044484
    %v544 = vsel %vm543, %v423, %v423
    %vm545 = vcmask 1046534
    %v546 = vsel %vm545, %v423, %v544
    %v547 = vrot.slane %v491, 7
    %vm548 = vcmask 1041409
    %v549 = vsel %vm548, %v547, %v546
    %vm550 = vcmask 1043459
    %v551 = vsel %vm550, %v547, %v549
    %vm552 = vcmask 1045509
    %v553 = vsel %vm552, %v547, %v551
    %vm554 = vcmask 1047559
    %v555 = vsel %vm554, %v547, %v553
    %v556 = vsel %vm543, %v440, %v440
    %v557 = vsel %vm545, %v440, %v556
    %v558 = vrot.slane %v508, 7
    %v559 = vsel %vm548, %v558, %v557
    %v560 = vsel %vm550, %v558, %v559
    %v561 = vsel %vm552, %v558, %v560
    %v562 = vsel %vm554, %v558, %v561
    %v563 = vsel %vm543, %v457, %v457
    %v564 = vsel %vm545, %v457, %v563
    %v565 = vrot.slane %v525, 7
    %v566 = vsel %vm548, %v565, %v564
    %v567 = vsel %vm550, %v565, %v566
    %v568 = vsel %vm552, %v565, %v567
    %v569 = vsel %vm554, %v565, %v568
    %v570 = vsel %vm543, %v474, %v474
    %v571 = vsel %vm545, %v474, %v570
    %v572 = vrot.slane %v542, 7
    %v573 = vsel %vm548, %v572, %v571
    %v574 = vsel %vm550, %v572, %v573
    %v575 = vsel %vm552, %v572, %v574
    %v576 = vsel %vm554, %v572, %v575
    %581 = vst [vmem:[#allocation5] sm:$0xff] %v555
    %582 = vst [vmem:[#allocation5 + $0x8] sm:$0xff] %v562
    %583 = vst [vmem:[#allocation5 + $0x10] sm:$0xff] %v569
    %584 = vst [vmem:[#allocation5 + $0x18] sm:$0xff] %v576
    // Predicated region
    $region10: #{tpu_custom_call.1} parent=1 // pred_check
      _
    $region11: #{tpu_custom_call.1} parent=1 // pred_check_branch
      %586 = sbr.rel (0) target = $region13
    $region12: #{tpu_custom_call.1} parent=1 // pred_region
      %s588 = ssub.s32 512, 512
      %589 = vsyncadd [#allocation4], %s588
      %s591 = sshll.u32 [#allocation5], 4
      %s592 = int_to_ptr.vmem [resolvable:$true] %s591
      %594 = dma.vmem_to_hbm [thread:$0]  %s592, 512, %s1, [#allocation4]
    $region13: #{tpu_custom_call.1} parent=1 // pred_fallthru
      _
    // Predicated region
    $region14: #{tpu_custom_call.1} parent=1 // pred_check
      _
    $region15: #{tpu_custom_call.1} parent=1 // pred_check_branch
      %596 = sbr.rel (0) target = $region17
    $region16: #{tpu_custom_call.1} parent=1 // pred_region
      %597 = dma.done [#allocation4], 512
    $region17: #{tpu_custom_call.1} parent=1 // pred_fallthru
      _
    %598 = vsyncpa [#allocation3], 1
    %599 = vsyncpa [#allocation4], 1

</llo_original>
